<compile_context>
chip_gen: v7x
topology: tpu7x:2x2x1
jax: 0.10.0
libtpu: 0.0.40
codegen_flags: <defaults>
</compile_context>

<pallas_src>
import jax
import jax.numpy as jnp
from jax.experimental import pallas as pl
from jax.experimental.pallas import tpu as pltpu


def _cdiv(a, b):
    return -(-a // b)


# ---------------------------------------------------------------------------
# Kernels
# ---------------------------------------------------------------------------

def _conv1x1_vpu_kernel(x_ref, w_ref, b_ref, o_ref):
    """Tiny-channel path: per-output-channel scalar*vreg FMAs on the VPU.

    x_ref: (n_blk, C_in,  t_s, 128)  VMEM, lane-dense spatial slabs
    w_ref: (C_out, C_in)             SMEM, float32
    b_ref: (C_out,)                  SMEM, float32
    o_ref: (n_blk, C_out, t_s, 128)  VMEM
    """
    c_in = x_ref.shape[1]
    c_out = o_ref.shape[1]
    for co in range(c_out):
        # Scalar-operand FMAs: no sublane/lane broadcasts, all work on VALU.
        acc = b_ref[co] + w_ref[co, 0] * x_ref[:, 0, :, :].astype(jnp.float32)
        for ci in range(1, c_in):
            acc = acc + w_ref[co, ci] * x_ref[:, ci, :, :].astype(jnp.float32)
        o_ref[:, co, :, :] = acc.astype(o_ref.dtype)


def _conv1x1_mxu_kernel(x_ref, w_ref, b_ref, o_ref):
    """Wide-channel path: (C_out, C_in) @ (C_in, hw_tile) on the MXU.

    x_ref: (C_in, hw_tile)  VMEM
    w_ref: (C_out, C_in)    VMEM (input dtype, stays packed for bf16)
    b_ref: (C_out, 1)       VMEM float32
    o_ref: (C_out, hw_tile) VMEM
    """
    acc = jnp.dot(w_ref[...], x_ref[...], preferred_element_type=jnp.float32)
    o_ref[...] = (acc + b_ref[...]).astype(o_ref.dtype)


# ---------------------------------------------------------------------------
# Tile sizing
# ---------------------------------------------------------------------------

def _pick_slab_tiles(n, s, row_bytes, target_bytes):
    """Choose (images-per-step, 8-aligned sublane rows per step)."""
    target_rows = max(8, target_bytes // max(row_bytes, 1))
    if s >= target_rows:
        n_blk = 1
        t_s = max(8, (min(target_rows, s) // 8) * 8)   # multiple of 8, <= s
    else:
        t_s = s                                        # full spatial extent
        n_blk = max(1, min(n, target_rows // max(s, 1)))
    # Guarantee >= 2 grid steps when there is enough work (v7x: 2 TensorCores).
    if _cdiv(n, n_blk) * _cdiv(s, t_s) < 2:
        if n >= 2:
            n_blk = _cdiv(n, 2)
        elif s >= 16:
            t_s = ((_cdiv(s, 2) + 7) // 8) * 8
    return n_blk, t_s


def _pick_flat_tile(n, hwp, col_bytes, target_bytes):
    """Lane tile (multiple of 128) for the MXU path."""
    hw_tile = max(128, ((target_bytes // max(col_bytes, 1)) // 128) * 128)
    hw_tile = min(hw_tile, hwp)
    if n * _cdiv(hwp, hw_tile) < 2 and hwp >= 256:
        hw_tile = ((hwp // 2 + 127) // 128) * 128
    return hw_tile


# ---------------------------------------------------------------------------
# Wrapper
# ---------------------------------------------------------------------------

def zero_conv2d(x_nchw, weight, bias, *, target_block_bytes=4 * 1024 * 1024):
    """1x1, stride=1, padding=0 Conv2d forward in native NCHW layout.

    x_nchw: (N, C_in, H, W)
    weight: (C_out, C_in, 1, 1)   (PyTorch conv weight layout)
    bias:   (C_out,)
    returns (N, C_out, H, W)
    """
    N, C_in, H, W = x_nchw.shape
    C_out = weight.shape[0]
    assert weight.shape[1] == C_in
    assert weight.shape[2:] == (1, 1), "only kernel_size=1 implemented"
    # TODO(synk): general kernel_size>1 / stride / padding not implemented
    # (module spec instantiates the default 1x1, stride=1, padding=0 conv).

    HW = H * W
    dtype = x_nchw.dtype
    itemsize = jnp.dtype(dtype).itemsize

    # Pad the spatial axis only up to the next lane multiple (<=127 extra
    # elements per (n, c) row).  All other boundary handling is in-grid.
    HWp = ((HW + 127) // 128) * 128
    x = x_nchw.reshape(N, C_in, HW)
    if HWp != HW:
        x = jnp.pad(x, ((0, 0), (0, 0), (0, HWp - HW)))

    cost = pl.CostEstimate(
        flops=2 * N * C_out * C_in * HW,
        transcendentals=0,
        bytes_accessed=N * (C_in + C_out) * HW * itemsize
        + (C_out * C_in + C_out) * 4,
    )
    cparams = dict(vmem_limit_bytes=32 * 1024 * 1024)

    if C_in * C_out <= 128:
        # ----- VPU scalar-FMA path (the ZeroConv2d regime, e.g. 4 -> 8) -----
        S = HWp // 128
        x4 = x.reshape(N, C_in, S, 128)                 # free for NCHW
        row_bytes = (C_in + C_out) * 128 * itemsize     # HBM bytes per s-row
        n_blk, t_s = _pick_slab_tiles(N, S, row_bytes, target_block_bytes)
        grid = (_cdiv(N, n_blk), _cdiv(S, t_s))

        w_smem = weight.reshape(C_out, C_in).astype(jnp.float32)
        b_smem = bias.astype(jnp.float32)

        out = pl.pallas_call(
            _conv1x1_vpu_kernel,
            out_shape=jax.ShapeDtypeStruct((N, C_out, S, 128), dtype),
            grid_spec=pltpu.PrefetchScalarGridSpec(
                num_scalar_prefetch=0,
                grid=grid,
                in_specs=[
                    pl.BlockSpec((n_blk, C_in, t_s, 128),
                                 lambda n, j: (n, 0, j, 0)),
                    pl.BlockSpec(memory_space=pltpu.MemorySpace.SMEM),
                    pl.BlockSpec(memory_space=pltpu.MemorySpace.SMEM),
                ],
                out_specs=pl.BlockSpec((n_blk, C_out, t_s, 128),
                                       lambda n, j: (n, 0, j, 0)),
            ),
            compiler_params=pltpu.CompilerParams(
                dimension_semantics=("parallel", "parallel"), **cparams),
            cost_estimate=cost,
        )(x4, w_smem, b_smem)
        out = out.reshape(N, C_out, HWp)
    else:
        # ----- MXU path for real channel counts -----
        col_bytes = (C_in + C_out) * itemsize
        hw_tile = _pick_flat_tile(N, HWp, col_bytes, target_block_bytes)
        grid = (N, _cdiv(HWp, hw_tile))

        w_mat = weight.reshape(C_out, C_in).astype(dtype)   # packed for bf16
        b_col = bias.reshape(C_out, 1).astype(jnp.float32)

        out = pl.pallas_call(
            _conv1x1_mxu_kernel,
            out_shape=jax.ShapeDtypeStruct((N, C_out, HWp), dtype),
            grid_spec=pltpu.PrefetchScalarGridSpec(
                num_scalar_prefetch=0,
                grid=grid,
                in_specs=[
                    pl.BlockSpec((None, C_in, hw_tile), lambda n, j: (n, 0, j)),
                    pl.BlockSpec((C_out, C_in), lambda n, j: (0, 0)),
                    pl.BlockSpec((C_out, 1), lambda n, j: (0, 0)),
                ],
                out_specs=pl.BlockSpec((None, C_out, hw_tile),
                                       lambda n, j: (n, 0, j)),
            ),
            compiler_params=pltpu.CompilerParams(
                dimension_semantics=("parallel", "parallel"), **cparams),
            cost_estimate=cost,
        )(x, w_mat, b_col)

    if HWp != HW:
        out = out[:, :, :HW]
    return out.reshape(N, C_out, H, W)


def _reference(x, weight, bias):
    w2d = weight.reshape(weight.shape[0], weight.shape[1])
    return (jnp.einsum('oc,nchw->nohw', w2d, x)
            + bias[None, :, None, None]).astype(x.dtype)


if __name__ == "__main__":
    key = jax.random.PRNGKey(0)

    # Module config: in_channels=4, out_channels=8, kernel_size=1 (default).
    N, C_in, H, W = 2, 4, 16, 16
    C_out = 8

    x = jax.random.normal(key, (N, C_in, H, W), dtype=jnp.float32)

    # --- Module semantics: zero-initialized weight and bias -> zero output.
    weight0 = jnp.zeros((C_out, C_in, 1, 1), dtype=jnp.float32)
    bias0 = jnp.zeros((C_out,), dtype=jnp.float32)
    y = jax.block_until_ready(zero_conv2d(x, weight0, bias0))
    assert y.shape == (N, C_out, H, W), y.shape
    assert y.dtype == x.dtype
    assert jnp.allclose(y, jnp.zeros_like(y)), "ZeroConv2d output must be zero"

    # --- Non-zero weights vs. reference (VPU scalar-FMA path).
    kw, kb = jax.random.split(jax.random.PRNGKey(1))
    weight1 = jax.random.normal(kw, (C_out, C_in, 1, 1), dtype=jnp.float32)
    bias1 = jax.random.normal(kb, (C_out,), dtype=jnp.float32)
    y1 = jax.block_until_ready(zero_conv2d(x, weight1, bias1))
    assert jnp.allclose(y1, _reference(x, weight1, bias1), atol=1e-5, rtol=1e-5)

    # --- Non-128-divisible spatial size (lane-pad path, 10x10 -> 128 lanes).
    x2 = jax.random.normal(jax.random.PRNGKey(2), (N, C_in, 10, 10),
                           dtype=jnp.float32)
    y2 = jax.block_until_ready(zero_conv2d(x2, weight1, bias1))
    assert jnp.allclose(y2, _reference(x2, weight1, bias1), atol=1e-5, rtol=1e-5)

    # --- Odd batch: partial final batch block (OOB writes dropped in-grid).
    x3 = jax.random.normal(jax.random.PRNGKey(3), (3, C_in, 16, 16),
                           dtype=jnp.float32)
    y3 = jax.block_until_ready(zero_conv2d(x3, weight1, bias1))
    assert jnp.allclose(y3, _reference(x3, weight1, bias1), atol=1e-5, rtol=1e-5)

    # --- Multi-step spatial grid with a partial final spatial block.
    x4 = jax.random.normal(jax.random.PRNGKey(4), (3, C_in, 48, 48),
                           dtype=jnp.float32)
    y4 = jax.block_until_ready(
        zero_conv2d(x4, weight1, bias1, target_block_bytes=16 * 1024))
    assert jnp.allclose(y4, _reference(x4, weight1, bias1), atol=1e-5, rtol=1e-5)

    # --- Wider channels take the MXU path (loose tol: MXU f32 pass rounding).
    kwm, kbm = jax.random.split(jax.random.PRNGKey(5))
    weight_m = jax.random.normal(kwm, (32, 16, 1, 1), dtype=jnp.float32)
    bias_m = jax.random.normal(kbm, (32,), dtype=jnp.float32)
    x_m = jax.random.normal(jax.random.PRNGKey(6), (2, 16, 16, 16),
                            dtype=jnp.float32)
    y_m = jax.block_until_ready(zero_conv2d(x_m, weight_m, bias_m))
    assert jnp.allclose(y_m, _reference(x_m, weight_m, bias_m),
                        atol=5e-2, rtol=5e-2)

    print("KERNEL_OK")
</pallas_src>

<mosaic_0001>
module attributes {stable_mosaic.version = 11 : i64} {
  func.func @_conv1x1_vpu_kernel(%arg0: i32, %arg1: i32, %arg2: memref<1x4x2x128xf32, #tpu.memory_space<vmem>>, %arg3: memref<8x4xf32, #tpu.memory_space<smem>>, %arg4: memref<8xf32, #tpu.memory_space<smem>>, %arg5: memref<1x8x2x128xf32, #tpu.memory_space<vmem>>) attributes {dimension_semantics = [#tpu.dimension_semantics<parallel>, #tpu.dimension_semantics<parallel>], iteration_bounds = array<i64: 2, 1>, scalar_prefetch = 0 : i64, scratch_operands = 0 : i64, tpu.core_type = #tpu.core_type<tc>, window_params = [{transform_indices = @transform_0, window_bounds = array<i64: 1, 4, 2, 128>}, {transform_indices = @transform_1, window_bounds = array<i64: 8, 4>}, {transform_indices = @transform_2, window_bounds = array<i64: 8>}, {transform_indices = @transform_3, window_bounds = array<i64: 1, 8, 2, 128>}]} {
    %c0 = arith.constant 0 : index
    %0 = memref.load %arg4[%c0] : memref<8xf32, #tpu.memory_space<smem>>
    %c0_0 = arith.constant 0 : index
    %c0_1 = arith.constant 0 : index
    %1 = memref.load %arg3[%c0_0, %c0_1] : memref<8x4xf32, #tpu.memory_space<smem>>
    %c0_2 = arith.constant 0 : index
    %c0_3 = arith.constant 0 : index
    %c0_4 = arith.constant 0 : index
    %c0_5 = arith.constant 0 : index
    %2 = vector.load %arg2[%c0_2, %c0_3, %c0_4, %c0_5] : memref<1x4x2x128xf32, #tpu.memory_space<vmem>>, vector<1x1x2x128xf32>
    %3 = vector.shape_cast %2 : vector<1x1x2x128xf32> to vector<1x2x128xf32>
    %4 = vector.broadcast %1 : f32 to vector<1x2x128xf32>
    %5 = arith.mulf %4, %3 : vector<1x2x128xf32>
    %6 = vector.broadcast %0 : f32 to vector<1x2x128xf32>
    %7 = arith.addf %6, %5 : vector<1x2x128xf32>
    %c0_6 = arith.constant 0 : index
    %c1 = arith.constant 1 : index
    %8 = memref.load %arg3[%c0_6, %c1] : memref<8x4xf32, #tpu.memory_space<smem>>
    %c0_7 = arith.constant 0 : index
    %c1_8 = arith.constant 1 : index
    %c0_9 = arith.constant 0 : index
    %c0_10 = arith.constant 0 : index
    %9 = vector.load %arg2[%c0_7, %c1_8, %c0_9, %c0_10] : memref<1x4x2x128xf32, #tpu.memory_space<vmem>>, vector<1x1x2x128xf32>
    %10 = vector.shape_cast %9 : vector<1x1x2x128xf32> to vector<1x2x128xf32>
    %11 = vector.broadcast %8 : f32 to vector<1x2x128xf32>
    %12 = arith.mulf %11, %10 : vector<1x2x128xf32>
    %13 = arith.addf %7, %12 : vector<1x2x128xf32>
    %c0_11 = arith.constant 0 : index
    %c2 = arith.constant 2 : index
    %14 = memref.load %arg3[%c0_11, %c2] : memref<8x4xf32, #tpu.memory_space<smem>>
    %c0_12 = arith.constant 0 : index
    %c2_13 = arith.constant 2 : index
    %c0_14 = arith.constant 0 : index
    %c0_15 = arith.constant 0 : index
    %15 = vector.load %arg2[%c0_12, %c2_13, %c0_14, %c0_15] : memref<1x4x2x128xf32, #tpu.memory_space<vmem>>, vector<1x1x2x128xf32>
    %16 = vector.shape_cast %15 : vector<1x1x2x128xf32> to vector<1x2x128xf32>
    %17 = vector.broadcast %14 : f32 to vector<1x2x128xf32>
    %18 = arith.mulf %17, %16 : vector<1x2x128xf32>
    %19 = arith.addf %13, %18 : vector<1x2x128xf32>
    %c0_16 = arith.constant 0 : index
    %c3 = arith.constant 3 : index
    %20 = memref.load %arg3[%c0_16, %c3] : memref<8x4xf32, #tpu.memory_space<smem>>
    %c0_17 = arith.constant 0 : index
    %c3_18 = arith.constant 3 : index
    %c0_19 = arith.constant 0 : index
    %c0_20 = arith.constant 0 : index
    %21 = vector.load %arg2[%c0_17, %c3_18, %c0_19, %c0_20] : memref<1x4x2x128xf32, #tpu.memory_space<vmem>>, vector<1x1x2x128xf32>
    %22 = vector.shape_cast %21 : vector<1x1x2x128xf32> to vector<1x2x128xf32>
    %23 = vector.broadcast %20 : f32 to vector<1x2x128xf32>
    %24 = arith.mulf %23, %22 : vector<1x2x128xf32>
    %25 = arith.addf %19, %24 : vector<1x2x128xf32>
    %c0_21 = arith.constant 0 : index
    %c0_22 = arith.constant 0 : index
    %c0_23 = arith.constant 0 : index
    %c0_24 = arith.constant 0 : index
    %26 = vector.load %arg5[%c0_21, %c0_22, %c0_23, %c0_24] : memref<1x8x2x128xf32, #tpu.memory_space<vmem>>, vector<1x1x2x128xf32>
    %27 = vector.shape_cast %26 : vector<1x1x2x128xf32> to vector<1x2x128xf32>
    %28 = vector.shape_cast %25 : vector<1x2x128xf32> to vector<1x1x2x128xf32>
    tpu.vector_store %arg5[%c0_21, %c0_22, %c0_23, %c0_24], %28 {strides = array<i32>} : memref<1x8x2x128xf32, #tpu.memory_space<vmem>>, vector<1x1x2x128xf32>,
    %c1_25 = arith.constant 1 : index
    %29 = memref.load %arg4[%c1_25] : memref<8xf32, #tpu.memory_space<smem>>
    %c1_26 = arith.constant 1 : index
    %c0_27 = arith.constant 0 : index
    %30 = memref.load %arg3[%c1_26, %c0_27] : memref<8x4xf32, #tpu.memory_space<smem>>
    %c0_28 = arith.constant 0 : index
    %c0_29 = arith.constant 0 : index
    %c0_30 = arith.constant 0 : index
    %c0_31 = arith.constant 0 : index
    %31 = vector.load %arg2[%c0_28, %c0_29, %c0_30, %c0_31] : memref<1x4x2x128xf32, #tpu.memory_space<vmem>>, vector<1x1x2x128xf32>
    %32 = vector.shape_cast %31 : vector<1x1x2x128xf32> to vector<1x2x128xf32>
    %33 = vector.broadcast %30 : f32 to vector<1x2x128xf32>
    %34 = arith.mulf %33, %32 : vector<1x2x128xf32>
    %35 = vector.broadcast %29 : f32 to vector<1x2x128xf32>
    %36 = arith.addf %35, %34 : vector<1x2x128xf32>
    %c1_32 = arith.constant 1 : index
    %c1_33 = arith.constant 1 : index
    %37 = memref.load %arg3[%c1_32, %c1_33] : memref<8x4xf32, #tpu.memory_space<smem>>
    %c0_34 = arith.constant 0 : index
    %c1_35 = arith.constant 1 : index
    %c0_36 = arith.constant 0 : index
    %c0_37 = arith.constant 0 : index
    %38 = vector.load %arg2[%c0_34, %c1_35, %c0_36, %c0_37] : memref<1x4x2x128xf32, #tpu.memory_space<vmem>>, vector<1x1x2x128xf32>
    %39 = vector.shape_cast %38 : vector<1x1x2x128xf32> to vector<1x2x128xf32>
    %40 = vector.broadcast %37 : f32 to vector<1x2x128xf32>
    %41 = arith.mulf %40, %39 : vector<1x2x128xf32>
    %42 = arith.addf %36, %41 : vector<1x2x128xf32>
    %c1_38 = arith.constant 1 : index
    %c2_39 = arith.constant 2 : index
    %43 = memref.load %arg3[%c1_38, %c2_39] : memref<8x4xf32, #tpu.memory_space<smem>>
    %c0_40 = arith.constant 0 : index
    %c2_41 = arith.constant 2 : index
    %c0_42 = arith.constant 0 : index
    %c0_43 = arith.constant 0 : index
    %44 = vector.load %arg2[%c0_40, %c2_41, %c0_42, %c0_43] : memref<1x4x2x128xf32, #tpu.memory_space<vmem>>, vector<1x1x2x128xf32>
    %45 = vector.shape_cast %44 : vector<1x1x2x128xf32> to vector<1x2x128xf32>
    %46 = vector.broadcast %43 : f32 to vector<1x2x128xf32>
    %47 = arith.mulf %46, %45 : vector<1x2x128xf32>
    %48 = arith.addf %42, %47 : vector<1x2x128xf32>
    %c1_44 = arith.constant 1 : index
    %c3_45 = arith.constant 3 : index
    %49 = memref.load %arg3[%c1_44, %c3_45] : memref<8x4xf32, #tpu.memory_space<smem>>
    %c0_46 = arith.constant 0 : index
    %c3_47 = arith.constant 3 : index
    %c0_48 = arith.constant 0 : index
    %c0_49 = arith.constant 0 : index
    %50 = vector.load %arg2[%c0_46, %c3_47, %c0_48, %c0_49] : memref<1x4x2x128xf32, #tpu.memory_space<vmem>>, vector<1x1x2x128xf32>
    %51 = vector.shape_cast %50 : vector<1x1x2x128xf32> to vector<1x2x128xf32>
    %52 = vector.broadcast %49 : f32 to vector<1x2x128xf32>
    %53 = arith.mulf %52, %51 : vector<1x2x128xf32>
    %54 = arith.addf %48, %53 : vector<1x2x128xf32>
    %c0_50 = arith.constant 0 : index
    %c1_51 = arith.constant 1 : index
    %c0_52 = arith.constant 0 : index
    %c0_53 = arith.constant 0 : index
    %55 = vector.load %arg5[%c0_50, %c1_51, %c0_52, %c0_53] : memref<1x8x2x128xf32, #tpu.memory_space<vmem>>, vector<1x1x2x128xf32>
    %56 = vector.shape_cast %55 : vector<1x1x2x128xf32> to vector<1x2x128xf32>
    %57 = vector.shape_cast %54 : vector<1x2x128xf32> to vector<1x1x2x128xf32>
    tpu.vector_store %arg5[%c0_50, %c1_51, %c0_52, %c0_53], %57 {strides = array<i32>} : memref<1x8x2x128xf32, #tpu.memory_space<vmem>>, vector<1x1x2x128xf32>,
    %c2_54 = arith.constant 2 : index
    %58 = memref.load %arg4[%c2_54] : memref<8xf32, #tpu.memory_space<smem>>
    %c2_55 = arith.constant 2 : index
    %c0_56 = arith.constant 0 : index
    %59 = memref.load %arg3[%c2_55, %c0_56] : memref<8x4xf32, #tpu.memory_space<smem>>
    %c0_57 = arith.constant 0 : index
    %c0_58 = arith.constant 0 : index
    %c0_59 = arith.constant 0 : index
    %c0_60 = arith.constant 0 : index
    %60 = vector.load %arg2[%c0_57, %c0_58, %c0_59, %c0_60] : memref<1x4x2x128xf32, #tpu.memory_space<vmem>>, vector<1x1x2x128xf32>
    %61 = vector.shape_cast %60 : vector<1x1x2x128xf32> to vector<1x2x128xf32>
    %62 = vector.broadcast %59 : f32 to vector<1x2x128xf32>
    %63 = arith.mulf %62, %61 : vector<1x2x128xf32>
    %64 = vector.broadcast %58 : f32 to vector<1x2x128xf32>
    %65 = arith.addf %64, %63 : vector<1x2x128xf32>
    %c2_61 = arith.constant 2 : index
    %c1_62 = arith.constant 1 : index
    %66 = memref.load %arg3[%c2_61, %c1_62] : memref<8x4xf32, #tpu.memory_space<smem>>
    %c0_63 = arith.constant 0 : index
    %c1_64 = arith.constant 1 : index
    %c0_65 = arith.constant 0 : index
    %c0_66 = arith.constant 0 : index
    %67 = vector.load %arg2[%c0_63, %c1_64, %c0_65, %c0_66] : memref<1x4x2x128xf32, #tpu.memory_space<vmem>>, vector<1x1x2x128xf32>
    %68 = vector.shape_cast %67 : vector<1x1x2x128xf32> to vector<1x2x128xf32>
    %69 = vector.broadcast %66 : f32 to vector<1x2x128xf32>
    %70 = arith.mulf %69, %68 : vector<1x2x128xf32>
    %71 = arith.addf %65, %70 : vector<1x2x128xf32>
    %c2_67 = arith.constant 2 : index
    %c2_68 = arith.constant 2 : index
    %72 = memref.load %arg3[%c2_67, %c2_68] : memref<8x4xf32, #tpu.memory_space<smem>>
    %c0_69 = arith.constant 0 : index
    %c2_70 = arith.constant 2 : index
    %c0_71 = arith.constant 0 : index
    %c0_72 = arith.constant 0 : index
    %73 = vector.load %arg2[%c0_69, %c2_70, %c0_71, %c0_72] : memref<1x4x2x128xf32, #tpu.memory_space<vmem>>, vector<1x1x2x128xf32>
    %74 = vector.shape_cast %73 : vector<1x1x2x128xf32> to vector<1x2x128xf32>
    %75 = vector.broadcast %72 : f32 to vector<1x2x128xf32>
    %76 = arith.mulf %75, %74 : vector<1x2x128xf32>
    %77 = arith.addf %71, %76 : vector<1x2x128xf32>
    %c2_73 = arith.constant 2 : index
    %c3_74 = arith.constant 3 : index
    %78 = memref.load %arg3[%c2_73, %c3_74] : memref<8x4xf32, #tpu.memory_space<smem>>
    %c0_75 = arith.constant 0 : index
    %c3_76 = arith.constant 3 : index
    %c0_77 = arith.constant 0 : index
    %c0_78 = arith.constant 0 : index
    %79 = vector.load %arg2[%c0_75, %c3_76, %c0_77, %c0_78] : memref<1x4x2x128xf32, #tpu.memory_space<vmem>>, vector<1x1x2x128xf32>
    %80 = vector.shape_cast %79 : vector<1x1x2x128xf32> to vector<1x2x128xf32>
    %81 = vector.broadcast %78 : f32 to vector<1x2x128xf32>
    %82 = arith.mulf %81, %80 : vector<1x2x128xf32>
    %83 = arith.addf %77, %82 : vector<1x2x128xf32>
    %c0_79 = arith.constant 0 : index
    %c2_80 = arith.constant 2 : index
    %c0_81 = arith.constant 0 : index
    %c0_82 = arith.constant 0 : index
    %84 = vector.load %arg5[%c0_79, %c2_80, %c0_81, %c0_82] : memref<1x8x2x128xf32, #tpu.memory_space<vmem>>, vector<1x1x2x128xf32>
    %85 = vector.shape_cast %84 : vector<1x1x2x128xf32> to vector<1x2x128xf32>
    %86 = vector.shape_cast %83 : vector<1x2x128xf32> to vector<1x1x2x128xf32>
    tpu.vector_store %arg5[%c0_79, %c2_80, %c0_81, %c0_82], %86 {strides = array<i32>} : memref<1x8x2x128xf32, #tpu.memory_space<vmem>>, vector<1x1x2x128xf32>,
    %c3_83 = arith.constant 3 : index
    %87 = memref.load %arg4[%c3_83] : memref<8xf32, #tpu.memory_space<smem>>
    %c3_84 = arith.constant 3 : index
    %c0_85 = arith.constant 0 : index
    %88 = memref.load %arg3[%c3_84, %c0_85] : memref<8x4xf32, #tpu.memory_space<smem>>
    %c0_86 = arith.constant 0 : index
    %c0_87 = arith.constant 0 : index
    %c0_88 = arith.constant 0 : index
    %c0_89 = arith.constant 0 : index
    %89 = vector.load %arg2[%c0_86, %c0_87, %c0_88, %c0_89] : memref<1x4x2x128xf32, #tpu.memory_space<vmem>>, vector<1x1x2x128xf32>
    %90 = vector.shape_cast %89 : vector<1x1x2x128xf32> to vector<1x2x128xf32>
    %91 = vector.broadcast %88 : f32 to vector<1x2x128xf32>
    %92 = arith.mulf %91, %90 : vector<1x2x128xf32>
    %93 = vector.broadcast %87 : f32 to vector<1x2x128xf32>
    %94 = arith.addf %93, %92 : vector<1x2x128xf32>
    %c3_90 = arith.constant 3 : index
    %c1_91 = arith.constant 1 : index
    %95 = memref.load %arg3[%c3_90, %c1_91] : memref<8x4xf32, #tpu.memory_space<smem>>
    %c0_92 = arith.constant 0 : index
    %c1_93 = arith.constant 1 : index
    %c0_94 = arith.constant 0 : index
    %c0_95 = arith.constant 0 : index
    %96 = vector.load %arg2[%c0_92, %c1_93, %c0_94, %c0_95] : memref<1x4x2x128xf32, #tpu.memory_space<vmem>>, vector<1x1x2x128xf32>
    %97 = vector.shape_cast %96 : vector<1x1x2x128xf32> to vector<1x2x128xf32>
    %98 = vector.broadcast %95 : f32 to vector<1x2x128xf32>
    %99 = arith.mulf %98, %97 : vector<1x2x128xf32>
    %100 = arith.addf %94, %99 : vector<1x2x128xf32>
    %c3_96 = arith.constant 3 : index
    %c2_97 = arith.constant 2 : index
    %101 = memref.load %arg3[%c3_96, %c2_97] : memref<8x4xf32, #tpu.memory_space<smem>>
    %c0_98 = arith.constant 0 : index
    %c2_99 = arith.constant 2 : index
    %c0_100 = arith.constant 0 : index
    %c0_101 = arith.constant 0 : index
    %102 = vector.load %arg2[%c0_98, %c2_99, %c0_100, %c0_101] : memref<1x4x2x128xf32, #tpu.memory_space<vmem>>, vector<1x1x2x128xf32>
    %103 = vector.shape_cast %102 : vector<1x1x2x128xf32> to vector<1x2x128xf32>
    %104 = vector.broadcast %101 : f32 to vector<1x2x128xf32>
    %105 = arith.mulf %104, %103 : vector<1x2x128xf32>
    %106 = arith.addf %100, %105 : vector<1x2x128xf32>
    %c3_102 = arith.constant 3 : index
    %c3_103 = arith.constant 3 : index
    %107 = memref.load %arg3[%c3_102, %c3_103] : memref<8x4xf32, #tpu.memory_space<smem>>
    %c0_104 = arith.constant 0 : index
    %c3_105 = arith.constant 3 : index
    %c0_106 = arith.constant 0 : index
    %c0_107 = arith.constant 0 : index
    %108 = vector.load %arg2[%c0_104, %c3_105, %c0_106, %c0_107] : memref<1x4x2x128xf32, #tpu.memory_space<vmem>>, vector<1x1x2x128xf32>
    %109 = vector.shape_cast %108 : vector<1x1x2x128xf32> to vector<1x2x128xf32>
    %110 = vector.broadcast %107 : f32 to vector<1x2x128xf32>
    %111 = arith.mulf %110, %109 : vector<1x2x128xf32>
    %112 = arith.addf %106, %111 : vector<1x2x128xf32>
    %c0_108 = arith.constant 0 : index
    %c3_109 = arith.constant 3 : index
    %c0_110 = arith.constant 0 : index
    %c0_111 = arith.constant 0 : index
    %113 = vector.load %arg5[%c0_108, %c3_109, %c0_110, %c0_111] : memref<1x8x2x128xf32, #tpu.memory_space<vmem>>, vector<1x1x2x128xf32>
    %114 = vector.shape_cast %113 : vector<1x1x2x128xf32> to vector<1x2x128xf32>
    %115 = vector.shape_cast %112 : vector<1x2x128xf32> to vector<1x1x2x128xf32>
    tpu.vector_store %arg5[%c0_108, %c3_109, %c0_110, %c0_111], %115 {strides = array<i32>} : memref<1x8x2x128xf32, #tpu.memory_space<vmem>>, vector<1x1x2x128xf32>,
    %c4 = arith.constant 4 : index
    %116 = memref.load %arg4[%c4] : memref<8xf32, #tpu.memory_space<smem>>
    %c4_112 = arith.constant 4 : index
    %c0_113 = arith.constant 0 : index
    %117 = memref.load %arg3[%c4_112, %c0_113] : memref<8x4xf32, #tpu.memory_space<smem>>
    %c0_114 = arith.constant 0 : index
    %c0_115 = arith.constant 0 : index
    %c0_116 = arith.constant 0 : index
    %c0_117 = arith.constant 0 : index
    %118 = vector.load %arg2[%c0_114, %c0_115, %c0_116, %c0_117] : memref<1x4x2x128xf32, #tpu.memory_space<vmem>>, vector<1x1x2x128xf32>
    %119 = vector.shape_cast %118 : vector<1x1x2x128xf32> to vector<1x2x128xf32>
    %120 = vector.broadcast %117 : f32 to vector<1x2x128xf32>
    %121 = arith.mulf %120, %119 : vector<1x2x128xf32>
    %122 = vector.broadcast %116 : f32 to vector<1x2x128xf32>
    %123 = arith.addf %122, %121 : vector<1x2x128xf32>
    %c4_118 = arith.constant 4 : index
    %c1_119 = arith.constant 1 : index
    %124 = memref.load %arg3[%c4_118, %c1_119] : memref<8x4xf32, #tpu.memory_space<smem>>
    %c0_120 = arith.constant 0 : index
    %c1_121 = arith.constant 1 : index
    %c0_122 = arith.constant 0 : index
    %c0_123 = arith.constant 0 : index
    %125 = vector.load %arg2[%c0_120, %c1_121, %c0_122, %c0_123] : memref<1x4x2x128xf32, #tpu.memory_space<vmem>>, vector<1x1x2x128xf32>
    %126 = vector.shape_cast %125 : vector<1x1x2x128xf32> to vector<1x2x128xf32>
    %127 = vector.broadcast %124 : f32 to vector<1x2x128xf32>
    %128 = arith.mulf %127, %126 : vector<1x2x128xf32>
    %129 = arith.addf %123, %128 : vector<1x2x128xf32>
    %c4_124 = arith.constant 4 : index
    %c2_125 = arith.constant 2 : index
    %130 = memref.load %arg3[%c4_124, %c2_125] : memref<8x4xf32, #tpu.memory_space<smem>>
    %c0_126 = arith.constant 0 : index
    %c2_127 = arith.constant 2 : index
    %c0_128 = arith.constant 0 : index
    %c0_129 = arith.constant 0 : index
    %131 = vector.load %arg2[%c0_126, %c2_127, %c0_128, %c0_129] : memref<1x4x2x128xf32, #tpu.memory_space<vmem>>, vector<1x1x2x128xf32>
    %132 = vector.shape_cast %131 : vector<1x1x2x128xf32> to vector<1x2x128xf32>
    %133 = vector.broadcast %130 : f32 to vector<1x2x128xf32>
    %134 = arith.mulf %133, %132 : vector<1x2x128xf32>
    %135 = arith.addf %129, %134 : vector<1x2x128xf32>
    %c4_130 = arith.constant 4 : index
    %c3_131 = arith.constant 3 : index
    %136 = memref.load %arg3[%c4_130, %c3_131] : memref<8x4xf32, #tpu.memory_space<smem>>
    %c0_132 = arith.constant 0 : index
    %c3_133 = arith.constant 3 : index
    %c0_134 = arith.constant 0 : index
    %c0_135 = arith.constant 0 : index
    %137 = vector.load %arg2[%c0_132, %c3_133, %c0_134, %c0_135] : memref<1x4x2x128xf32, #tpu.memory_space<vmem>>, vector<1x1x2x128xf32>
    %138 = vector.shape_cast %137 : vector<1x1x2x128xf32> to vector<1x2x128xf32>
    %139 = vector.broadcast %136 : f32 to vector<1x2x128xf32>
    %140 = arith.mulf %139, %138 : vector<1x2x128xf32>
    %141 = arith.addf %135, %140 : vector<1x2x128xf32>
    %c0_136 = arith.constant 0 : index
    %c4_137 = arith.constant 4 : index
    %c0_138 = arith.constant 0 : index
    %c0_139 = arith.constant 0 : index
    %142 = vector.load %arg5[%c0_136, %c4_137, %c0_138, %c0_139] : memref<1x8x2x128xf32, #tpu.memory_space<vmem>>, vector<1x1x2x128xf32>
    %143 = vector.shape_cast %142 : vector<1x1x2x128xf32> to vector<1x2x128xf32>
    %144 = vector.shape_cast %141 : vector<1x2x128xf32> to vector<1x1x2x128xf32>
    tpu.vector_store %arg5[%c0_136, %c4_137, %c0_138, %c0_139], %144 {strides = array<i32>} : memref<1x8x2x128xf32, #tpu.memory_space<vmem>>, vector<1x1x2x128xf32>,
    %c5 = arith.constant 5 : index
    %145 = memref.load %arg4[%c5] : memref<8xf32, #tpu.memory_space<smem>>
    %c5_140 = arith.constant 5 : index
    %c0_141 = arith.constant 0 : index
    %146 = memref.load %arg3[%c5_140, %c0_141] : memref<8x4xf32, #tpu.memory_space<smem>>
    %c0_142 = arith.constant 0 : index
    %c0_143 = arith.constant 0 : index
    %c0_144 = arith.constant 0 : index
    %c0_145 = arith.constant 0 : index
    %147 = vector.load %arg2[%c0_142, %c0_143, %c0_144, %c0_145] : memref<1x4x2x128xf32, #tpu.memory_space<vmem>>, vector<1x1x2x128xf32>
    %148 = vector.shape_cast %147 : vector<1x1x2x128xf32> to vector<1x2x128xf32>
    %149 = vector.broadcast %146 : f32 to vector<1x2x128xf32>
    %150 = arith.mulf %149, %148 : vector<1x2x128xf32>
    %151 = vector.broadcast %145 : f32 to vector<1x2x128xf32>
    %152 = arith.addf %151, %150 : vector<1x2x128xf32>
    %c5_146 = arith.constant 5 : index
    %c1_147 = arith.constant 1 : index
    %153 = memref.load %arg3[%c5_146, %c1_147] : memref<8x4xf32, #tpu.memory_space<smem>>
    %c0_148 = arith.constant 0 : index
    %c1_149 = arith.constant 1 : index
    %c0_150 = arith.constant 0 : index
    %c0_151 = arith.constant 0 : index
    %154 = vector.load %arg2[%c0_148, %c1_149, %c0_150, %c0_151] : memref<1x4x2x128xf32, #tpu.memory_space<vmem>>, vector<1x1x2x128xf32>
    %155 = vector.shape_cast %154 : vector<1x1x2x128xf32> to vector<1x2x128xf32>
    %156 = vector.broadcast %153 : f32 to vector<1x2x128xf32>
    %157 = arith.mulf %156, %155 : vector<1x2x128xf32>
    %158 = arith.addf %152, %157 : vector<1x2x128xf32>
    %c5_152 = arith.constant 5 : index
    %c2_153 = arith.constant 2 : index
    %159 = memref.load %arg3[%c5_152, %c2_153] : memref<8x4xf32, #tpu.memory_space<smem>>
    %c0_154 = arith.constant 0 : index
    %c2_155 = arith.constant 2 : index
    %c0_156 = arith.constant 0 : index
    %c0_157 = arith.constant 0 : index
    %160 = vector.load %arg2[%c0_154, %c2_155, %c0_156, %c0_157] : memref<1x4x2x128xf32, #tpu.memory_space<vmem>>, vector<1x1x2x128xf32>
    %161 = vector.shape_cast %160 : vector<1x1x2x128xf32> to vector<1x2x128xf32>
    %162 = vector.broadcast %159 : f32 to vector<1x2x128xf32>
    %163 = arith.mulf %162, %161 : vector<1x2x128xf32>
    %164 = arith.addf %158, %163 : vector<1x2x128xf32>
    %c5_158 = arith.constant 5 : index
    %c3_159 = arith.constant 3 : index
    %165 = memref.load %arg3[%c5_158, %c3_159] : memref<8x4xf32, #tpu.memory_space<smem>>
    %c0_160 = arith.constant 0 : index
    %c3_161 = arith.constant 3 : index
    %c0_162 = arith.constant 0 : index
    %c0_163 = arith.constant 0 : index
    %166 = vector.load %arg2[%c0_160, %c3_161, %c0_162, %c0_163] : memref<1x4x2x128xf32, #tpu.memory_space<vmem>>, vector<1x1x2x128xf32>
    %167 = vector.shape_cast %166 : vector<1x1x2x128xf32> to vector<1x2x128xf32>
    %168 = vector.broadcast %165 : f32 to vector<1x2x128xf32>
    %169 = arith.mulf %168, %167 : vector<1x2x128xf32>
    %170 = arith.addf %164, %169 : vector<1x2x128xf32>
    %c0_164 = arith.constant 0 : index
    %c5_165 = arith.constant 5 : index
    %c0_166 = arith.constant 0 : index
    %c0_167 = arith.constant 0 : index
    %171 = vector.load %arg5[%c0_164, %c5_165, %c0_166, %c0_167] : memref<1x8x2x128xf32, #tpu.memory_space<vmem>>, vector<1x1x2x128xf32>
    %172 = vector.shape_cast %171 : vector<1x1x2x128xf32> to vector<1x2x128xf32>
    %173 = vector.shape_cast %170 : vector<1x2x128xf32> to vector<1x1x2x128xf32>
    tpu.vector_store %arg5[%c0_164, %c5_165, %c0_166, %c0_167], %173 {strides = array<i32>} : memref<1x8x2x128xf32, #tpu.memory_space<vmem>>, vector<1x1x2x128xf32>,
    %c6 = arith.constant 6 : index
    %174 = memref.load %arg4[%c6] : memref<8xf32, #tpu.memory_space<smem>>
    %c6_168 = arith.constant 6 : index
    %c0_169 = arith.constant 0 : index
    %175 = memref.load %arg3[%c6_168, %c0_169] : memref<8x4xf32, #tpu.memory_space<smem>>
    %c0_170 = arith.constant 0 : index
    %c0_171 = arith.constant 0 : index
    %c0_172 = arith.constant 0 : index
    %c0_173 = arith.constant 0 : index
    %176 = vector.load %arg2[%c0_170, %c0_171, %c0_172, %c0_173] : memref<1x4x2x128xf32, #tpu.memory_space<vmem>>, vector<1x1x2x128xf32>
    %177 = vector.shape_cast %176 : vector<1x1x2x128xf32> to vector<1x2x128xf32>
    %178 = vector.broadcast %175 : f32 to vector<1x2x128xf32>
    %179 = arith.mulf %178, %177 : vector<1x2x128xf32>
    %180 = vector.broadcast %174 : f32 to vector<1x2x128xf32>
    %181 = arith.addf %180, %179 : vector<1x2x128xf32>
    %c6_174 = arith.constant 6 : index
    %c1_175 = arith.constant 1 : index
    %182 = memref.load %arg3[%c6_174, %c1_175] : memref<8x4xf32, #tpu.memory_space<smem>>
    %c0_176 = arith.constant 0 : index
    %c1_177 = arith.constant 1 : index
    %c0_178 = arith.constant 0 : index
    %c0_179 = arith.constant 0 : index
    %183 = vector.load %arg2[%c0_176, %c1_177, %c0_178, %c0_179] : memref<1x4x2x128xf32, #tpu.memory_space<vmem>>, vector<1x1x2x128xf32>
    %184 = vector.shape_cast %183 : vector<1x1x2x128xf32> to vector<1x2x128xf32>
    %185 = vector.broadcast %182 : f32 to vector<1x2x128xf32>
    %186 = arith.mulf %185, %184 : vector<1x2x128xf32>
    %187 = arith.addf %181, %186 : vector<1x2x128xf32>
    %c6_180 = arith.constant 6 : index
    %c2_181 = arith.constant 2 : index
    %188 = memref.load %arg3[%c6_180, %c2_181] : memref<8x4xf32, #tpu.memory_space<smem>>
    %c0_182 = arith.constant 0 : index
    %c2_183 = arith.constant 2 : index
    %c0_184 = arith.constant 0 : index
    %c0_185 = arith.constant 0 : index
    %189 = vector.load %arg2[%c0_182, %c2_183, %c0_184, %c0_185] : memref<1x4x2x128xf32, #tpu.memory_space<vmem>>, vector<1x1x2x128xf32>
    %190 = vector.shape_cast %189 : vector<1x1x2x128xf32> to vector<1x2x128xf32>
    %191 = vector.broadcast %188 : f32 to vector<1x2x128xf32>
    %192 = arith.mulf %191, %190 : vector<1x2x128xf32>
    %193 = arith.addf %187, %192 : vector<1x2x128xf32>
    %c6_186 = arith.constant 6 : index
    %c3_187 = arith.constant 3 : index
    %194 = memref.load %arg3[%c6_186, %c3_187] : memref<8x4xf32, #tpu.memory_space<smem>>
    %c0_188 = arith.constant 0 : index
    %c3_189 = arith.constant 3 : index
    %c0_190 = arith.constant 0 : index
    %c0_191 = arith.constant 0 : index
    %195 = vector.load %arg2[%c0_188, %c3_189, %c0_190, %c0_191] : memref<1x4x2x128xf32, #tpu.memory_space<vmem>>, vector<1x1x2x128xf32>
    %196 = vector.shape_cast %195 : vector<1x1x2x128xf32> to vector<1x2x128xf32>
    %197 = vector.broadcast %194 : f32 to vector<1x2x128xf32>
    %198 = arith.mulf %197, %196 : vector<1x2x128xf32>
    %199 = arith.addf %193, %198 : vector<1x2x128xf32>
    %c0_192 = arith.constant 0 : index
    %c6_193 = arith.constant 6 : index
    %c0_194 = arith.constant 0 : index
    %c0_195 = arith.constant 0 : index
    %200 = vector.load %arg5[%c0_192, %c6_193, %c0_194, %c0_195] : memref<1x8x2x128xf32, #tpu.memory_space<vmem>>, vector<1x1x2x128xf32>
    %201 = vector.shape_cast %200 : vector<1x1x2x128xf32> to vector<1x2x128xf32>
    %202 = vector.shape_cast %199 : vector<1x2x128xf32> to vector<1x1x2x128xf32>
    tpu.vector_store %arg5[%c0_192, %c6_193, %c0_194, %c0_195], %202 {strides = array<i32>} : memref<1x8x2x128xf32, #tpu.memory_space<vmem>>, vector<1x1x2x128xf32>,
    %c7 = arith.constant 7 : index
    %203 = memref.load %arg4[%c7] : memref<8xf32, #tpu.memory_space<smem>>
    %c7_196 = arith.constant 7 : index
    %c0_197 = arith.constant 0 : index
    %204 = memref.load %arg3[%c7_196, %c0_197] : memref<8x4xf32, #tpu.memory_space<smem>>
    %c0_198 = arith.constant 0 : index
    %c0_199 = arith.constant 0 : index
    %c0_200 = arith.constant 0 : index
    %c0_201 = arith.constant 0 : index
    %205 = vector.load %arg2[%c0_198, %c0_199, %c0_200, %c0_201] : memref<1x4x2x128xf32, #tpu.memory_space<vmem>>, vector<1x1x2x128xf32>
    %206 = vector.shape_cast %205 : vector<1x1x2x128xf32> to vector<1x2x128xf32>
    %207 = vector.broadcast %204 : f32 to vector<1x2x128xf32>
    %208 = arith.mulf %207, %206 : vector<1x2x128xf32>
    %209 = vector.broadcast %203 : f32 to vector<1x2x128xf32>
    %210 = arith.addf %209, %208 : vector<1x2x128xf32>
    %c7_202 = arith.constant 7 : index
    %c1_203 = arith.constant 1 : index
    %211 = memref.load %arg3[%c7_202, %c1_203] : memref<8x4xf32, #tpu.memory_space<smem>>
    %c0_204 = arith.constant 0 : index
    %c1_205 = arith.constant 1 : index
    %c0_206 = arith.constant 0 : index
    %c0_207 = arith.constant 0 : index
    %212 = vector.load %arg2[%c0_204, %c1_205, %c0_206, %c0_207] : memref<1x4x2x128xf32, #tpu.memory_space<vmem>>, vector<1x1x2x128xf32>
    %213 = vector.shape_cast %212 : vector<1x1x2x128xf32> to vector<1x2x128xf32>
    %214 = vector.broadcast %211 : f32 to vector<1x2x128xf32>
    %215 = arith.mulf %214, %213 : vector<1x2x128xf32>
    %216 = arith.addf %210, %215 : vector<1x2x128xf32>
    %c7_208 = arith.constant 7 : index
    %c2_209 = arith.constant 2 : index
    %217 = memref.load %arg3[%c7_208, %c2_209] : memref<8x4xf32, #tpu.memory_space<smem>>
    %c0_210 = arith.constant 0 : index
    %c2_211 = arith.constant 2 : index
    %c0_212 = arith.constant 0 : index
    %c0_213 = arith.constant 0 : index
    %218 = vector.load %arg2[%c0_210, %c2_211, %c0_212, %c0_213] : memref<1x4x2x128xf32, #tpu.memory_space<vmem>>, vector<1x1x2x128xf32>
    %219 = vector.shape_cast %218 : vector<1x1x2x128xf32> to vector<1x2x128xf32>
    %220 = vector.broadcast %217 : f32 to vector<1x2x128xf32>
    %221 = arith.mulf %220, %219 : vector<1x2x128xf32>
    %222 = arith.addf %216, %221 : vector<1x2x128xf32>
    %c7_214 = arith.constant 7 : index
    %c3_215 = arith.constant 3 : index
    %223 = memref.load %arg3[%c7_214, %c3_215] : memref<8x4xf32, #tpu.memory_space<smem>>
    %c0_216 = arith.constant 0 : index
    %c3_217 = arith.constant 3 : index
    %c0_218 = arith.constant 0 : index
    %c0_219 = arith.constant 0 : index
    %224 = vector.load %arg2[%c0_216, %c3_217, %c0_218, %c0_219] : memref<1x4x2x128xf32, #tpu.memory_space<vmem>>, vector<1x1x2x128xf32>
    %225 = vector.shape_cast %224 : vector<1x1x2x128xf32> to vector<1x2x128xf32>
    %226 = vector.broadcast %223 : f32 to vector<1x2x128xf32>
    %227 = arith.mulf %226, %225 : vector<1x2x128xf32>
    %228 = arith.addf %222, %227 : vector<1x2x128xf32>
    %c0_220 = arith.constant 0 : index
    %c7_221 = arith.constant 7 : index
    %c0_222 = arith.constant 0 : index
    %c0_223 = arith.constant 0 : index
    %229 = vector.load %arg5[%c0_220, %c7_221, %c0_222, %c0_223] : memref<1x8x2x128xf32, #tpu.memory_space<vmem>>, vector<1x1x2x128xf32>
    %230 = vector.shape_cast %229 : vector<1x1x2x128xf32> to vector<1x2x128xf32>
    %231 = vector.shape_cast %228 : vector<1x2x128xf32> to vector<1x1x2x128xf32>
    tpu.vector_store %arg5[%c0_220, %c7_221, %c0_222, %c0_223], %231 {strides = array<i32>} : memref<1x8x2x128xf32, #tpu.memory_space<vmem>>, vector<1x1x2x128xf32>,
    return
  }
  func.func @transform_0(%arg0: i32, %arg1: i32) -> (i32, i32, i32, i32) {
    %c0_i32 = arith.constant 0 : i32
    %c0_i32_0 = arith.constant 0 : i32
    %c0_i32_1 = arith.constant 0 : i32
    return %arg0, %c0_i32, %arg1, %c0_i32_0 : i32, i32, i32, i32
  }
  func.func @transform_1(%arg0: i32, %arg1: i32) -> (i32, i32) {
    %c0_i32 = arith.constant 0 : i32
    %c0_i32_0 = arith.constant 0 : i32
    %c0_i32_1 = arith.constant 0 : i32
    return %c0_i32, %c0_i32_0 : i32, i32
  }
  func.func @transform_2(%arg0: i32, %arg1: i32) -> i32 {
    %c0_i32 = arith.constant 0 : i32
    %c0_i32_0 = arith.constant 0 : i32
    return %c0_i32 : i32
  }
  func.func @transform_3(%arg0: i32, %arg1: i32) -> (i32, i32, i32, i32) {
    %c0_i32 = arith.constant 0 : i32
    %c0_i32_0 = arith.constant 0 : i32
    %c0_i32_1 = arith.constant 0 : i32
    return %arg0, %c0_i32, %arg1, %c0_i32_0 : i32, i32, i32, i32
  }
}

</mosaic_0001>

<llo_original>
// kernel: tpu_custom_call.1
$region0: #{tpu_custom_call.1}
  #allocation0 [shape = 'u32[]', space=smem, size = 0x4, offset = 0x4, fixed_abs, tag = 'smem constant byte address 0x4 - core index']
  #allocation1 [shape = 'u32[144,128]{1,0:T(1,128)}', space=vmem, size = 0x12000, scoped, tag = 'internal scratch']
  %s0 = inlined_call_operand.hbm [shape: f32[2,4,2,128], index: 0, kind: input, shape index: {}]
  %s1 = inlined_call_operand.vmem [shape: f32[8,4], index: 1, kind: input, shape index: {}]
  %s2 = inlined_call_operand.vmem [shape: f32[8], index: 2, kind: input, shape index: {}]
  %s3 = inlined_call_operand.hbm [shape: f32[2,8,2,128], index: 3, kind: output, shape index: {}]
  %s4 = sld [smem:[#allocation0]]
  $region57: #{tpu_custom_call.1} parent=0
    _
  %s6 = ssub.s32 1, %s4
  %s7 = scalar_select 0, %s6, %s4
  $region1: #{tpu_custom_call.1} parent=0
    #allocation2 [shape = 'u8[8192]{0}', space=vmem, size = 0x2000, scoped, tag = 'input window, operand 0']
    #allocation3 [shape = 's32[2]{0}', space=sflag, size = 0x8, scoped, tag = 'scoped memory for tpu_custom_call.1']
    #allocation4 [shape = 's32[2]{0}', space=sflag, size = 0x8, scoped, tag = 'scoped memory for tpu_custom_call.1']
    #allocation5 [shape = 's32[2]{0}', space=sflag, size = 0x8, scoped, tag = 'scoped memory for tpu_custom_call.1']
    #allocation6 [shape = 'u8[4096]{0}', space=smem, size = 0x1000, scoped, tag = 'input window, operand 1, single buffered']
    #allocation7 [shape = 'u8[512]{0}', space=smem, size = 0x200, scoped, tag = 'input window, operand 2, single buffered']
    #allocation8 [shape = 's32[1]{0}', space=sflag, size = 0x4, scoped, tag = 'scoped memory for tpu_custom_call.1']
    #allocation9 [shape = 'u8[16384]{0}', space=vmem, size = 0x4000, scoped, tag = 'output window, operand 0']
    %8 = vsyncpa [#allocation3], 0
    %s9 = scalar_lea.sflag [#allocation3], 1
    %10 = vsyncpa %s9, 0
    %11 = vsyncpa [#allocation5], 0
    %12 = vsyncpa [#allocation8], 0
    %13 = vsyncpa [#allocation4], 0
    %s14 = scalar_lea.sflag [#allocation4], 1
    %15 = vsyncpa %s14, 0
    loop: start=0, step=1, limit=4
    $region2: #{tpu_custom_call.1} parent=1 // loop_pre_header
      _
    $region3: #{tpu_custom_call.1} parent=1 // loop_header
      %s17 = sphi 0, %s21
      %p18 = scmp.ge.s32.totalorder %s17, 4
      %s24 = sphi 0, %s36
      %s25 = sphi 0, %s32
      %s26 = sphi 0, %s24
      %s27 = sphi 0, %s25
      %s28 = sphi 0, %s26
      %s29 = sphi 0, %s27
      %s41 = sphi 0, %s43
      %s44 = sphi 0, %s41
      %s45 = sphi 0, %s44
      %s61 = sphi 0, %s45
      %s65 = sphi 0, %s65
      %s67 = sphi 0, %s65
      %s68 = sphi 0, %s67
      %s82 = sphi 0, %s68
      %s86 = sphi 0, %s86
      %s88 = sphi 0, %s86
      %s89 = sphi 0, %s88
      %s103 = sphi 0, %s89
      %s111 = sphi 0, %s113
      %s114 = sphi 0, %s111
      %s115 = sphi 0, %s114
      %s131 = sphi 0, %s115
    $region4: #{tpu_custom_call.1} parent=1 // loop_header_branch
      %20 = sbr.rel (%p18) target = $region8
    $region5: #{tpu_custom_call.1} parent=1 // loop_body
      %s22 = ssub.s32 %s17, 1
      %s23 = ssub.s32 %s17, 2
      %s30 = sadd.s32 1, %s25
      %p31 = scmp.ge.s32.totalorder %s30, 1
      %s32 = scalar_select %p31, 0, %s30
      %s33 = sadd.s32 1, %s24
      %s34 = scalar_select %p31, %s33, %s24
      %p35 = scmp.ge.s32.totalorder %s34, 2
      %s36 = scalar_select %p35, 0, %s34
      %s37 = ssub.s32 %s24, %s36
      %s38 = ssub.s32 %s25, %s32
      %s39 = sor.u32 %s37, %s38
      %p40 = scmp.eq.s32.totalorder %s39, 0
      %s42 = sadd.s32 %s41, 1
      %s43 = scalar_select %p40, %s41, %s42
      %p46 = pneg %p40
      %p47 = scmp.eq.s32.totalorder %s17, 1
      %p48 = por %p46, %p47
      %p49 = scmp.ne.s32.totalorder %s41, %s44
      %p50 = scmp.eq.s32.totalorder %s17, 0
      %p51 = por %p49, %p50
      %p52 = scmp.ne.s32.totalorder %s41, %s44
      %p53 = scmp.eq.s32.totalorder %s22, 1
      %p54 = por %p52, %p53
      %p55 = scmp.ne.s32.totalorder %s44, %s45
      %p56 = scmp.eq.s32.totalorder %s22, 0
      %p57 = por %p55, %p56
      %p58 = scmp.ne.s32.totalorder %s44, %s45
      %p59 = scmp.eq.s32.totalorder %s23, 1
      %p60 = por %p58, %p59
      %p62 = scmp.ne.s32.totalorder %s45, %s61
      %p63 = scmp.eq.s32.totalorder %s23, 0
      %p64 = por %p62, %p63
      %s66 = sadd.s32 %s65, 1
      %p69 = scmp.eq.s32.totalorder %s17, 1
      %p70 = scmp.ne.s32.totalorder %s65, %s67
      %p71 = scmp.eq.s32.totalorder %s17, 0
      %p72 = por %p70, %p71
      %p73 = scmp.ne.s32.totalorder %s65, %s67
      %p74 = scmp.eq.s32.totalorder %s22, 1
      %p75 = por %p73, %p74
      %p76 = scmp.ne.s32.totalorder %s67, %s68
      %p77 = scmp.eq.s32.totalorder %s22, 0
      %p78 = por %p76, %p77
      %p79 = scmp.ne.s32.totalorder %s67, %s68
      %p80 = scmp.eq.s32.totalorder %s23, 1
      %p81 = por %p79, %p80
      %p83 = scmp.ne.s32.totalorder %s68, %s82
      %p84 = scmp.eq.s32.totalorder %s23, 0
      %p85 = por %p83, %p84
      %s87 = sadd.s32 %s86, 1
      %p90 = scmp.eq.s32.totalorder %s17, 1
      %p91 = scmp.ne.s32.totalorder %s86, %s88
      %p92 = scmp.eq.s32.totalorder %s17, 0
      %p93 = por %p91, %p92
      %p94 = scmp.ne.s32.totalorder %s86, %s88
      %p95 = scmp.eq.s32.totalorder %s22, 1
      %p96 = por %p94, %p95
      %p97 = scmp.ne.s32.totalorder %s88, %s89
      %p98 = scmp.eq.s32.totalorder %s22, 0
      %p99 = por %p97, %p98
      %p100 = scmp.ne.s32.totalorder %s88, %s89
      %p101 = scmp.eq.s32.totalorder %s23, 1
      %p102 = por %p100, %p101
      %p104 = scmp.ne.s32.totalorder %s89, %s103
      %p105 = scmp.eq.s32.totalorder %s23, 0
      %p106 = por %p104, %p105
      %s107 = ssub.s32 %s24, %s36
      %s108 = ssub.s32 %s25, %s32
      %s109 = sor.u32 %s107, %s108
      %p110 = scmp.eq.s32.totalorder %s109, 0
      %s112 = sadd.s32 %s111, 1
      %s113 = scalar_select %p110, %s111, %s112
      %p116 = pneg %p110
      %p117 = scmp.eq.s32.totalorder %s17, 1
      %p118 = por %p116, %p117
      %p119 = scmp.ne.s32.totalorder %s111, %s114
      %p120 = scmp.eq.s32.totalorder %s17, 0
      %p121 = por %p119, %p120
      %p122 = scmp.ne.s32.totalorder %s111, %s114
      %p123 = scmp.eq.s32.totalorder %s22, 1
      %p124 = por %p122, %p123
      %p125 = scmp.ne.s32.totalorder %s114, %s115
      %p126 = scmp.eq.s32.totalorder %s22, 0
      %p127 = por %p125, %p126
      %p128 = scmp.ne.s32.totalorder %s114, %s115
      %p129 = scmp.eq.s32.totalorder %s23, 1
      %p130 = por %p128, %p129
      %p132 = scmp.ne.s32.totalorder %s115, %s131
      %p133 = scmp.eq.s32.totalorder %s23, 0
      %p134 = por %p132, %p133
      %p135 = scmp.le.s32.totalorder 1, %s17
      %p136 = scmp.lt.s32.totalorder %s17, 3
      %p137 = pnand %p135, %p136
      %p138 = pneg %p137
      // Predicated region
      $region9: #{tpu_custom_call.1} parent=5 // pred_check
        _
      $region10: #{tpu_custom_call.1} parent=5 // pred_check_branch
        %140 = sbr.rel (%p137) target = $region12
      $region11: #{tpu_custom_call.1} parent=5 // pred_region
        %s141 = ssub.s32 %s17, 1
        // Predicated region
        $region13: #{tpu_custom_call.1} parent=11 // pred_check
          %p142 = pneg %p78
        $region14: #{tpu_custom_call.1} parent=11 // pred_check_branch
          %144 = sbr.rel (%p142) target = $region16
        $region15: #{tpu_custom_call.1} parent=11 // pred_region
          %s146 = ssub.s32 128, 128
          %147 = vsyncadd [#allocation5], %s146
          %s149 = sshll.u32 %s1, 4
          %s150 = int_to_ptr.vmem [resolvable:$true] %s149
          %152 = dma.vmem_to_smem %s150, 128, [#allocation6], [#allocation5]
        $region16: #{tpu_custom_call.1} parent=11 // pred_fallthru
          _
        // Predicated region
        $region17: #{tpu_custom_call.1} parent=11 // pred_check
          %p153 = pneg %p99
        $region18: #{tpu_custom_call.1} parent=11 // pred_check_branch
          %155 = sbr.rel (%p153) target = $region20
        $region19: #{tpu_custom_call.1} parent=11 // pred_region
          %s157 = ssub.s32 16, 16
          %158 = vsyncadd [#allocation8], %s157
          %s160 = sshll.u32 %s2, 4
          %s161 = int_to_ptr.vmem [resolvable:$true] %s160
          %163 = dma.vmem_to_smem %s161, 16, [#allocation7], [#allocation8]
        $region20: #{tpu_custom_call.1} parent=11 // pred_fallthru
          _
      $region12: #{tpu_custom_call.1} parent=5 // pred_fallthru
        _
      %p164 = scmp.lt.s32.totalorder %s17, 2
      // Predicated region
      $region21: #{tpu_custom_call.1} parent=5 // pred_check
        %p165 = pneg %p164
      $region22: #{tpu_custom_call.1} parent=5 // pred_check_branch
        %167 = sbr.rel (%p165) target = $region24
      $region23: #{tpu_custom_call.1} parent=5 // pred_region
        // Predicated region
        $region25: #{tpu_custom_call.1} parent=23 // pred_check
          %p168 = pneg %p51
        $region26: #{tpu_custom_call.1} parent=23 // pred_check_branch
          %170 = sbr.rel (%p168) target = $region28
        $region27: #{tpu_custom_call.1} parent=23 // pred_region
          %s171 = sand.u32 %s41, 1
          %s172 = scalar_lea.sflag [#allocation3], %s171
          %s173 = sand.u32 %s41, 1
          %s174 = smul.addr %s173, 8
          %s175 = scalar_lea.vmem [#allocation2], %s174
          %s177 = ssub.s32 128, 128
          %178 = vsyncadd %s172, %s177
          %s179 = smul.addr %s24, 4
          %s180 = sadd.s32 %s25, %s179
          %s181 = smul.addr %s180, 32
          %s182 = scalar_lea.hbm %s0, %s181
          %s183 = sshll.u32 %s175, 4
          %s184 = int_to_ptr.vmem [resolvable:$true] %s183
          %189 = dma.hbm_to_vmem [thread:$0]  %s182, 128, %s184, %s172, 32, 32, 2
        $region28: #{tpu_custom_call.1} parent=23 // pred_fallthru
          _
      $region24: #{tpu_custom_call.1} parent=5 // pred_fallthru
        _
      %p190 = scmp.le.s32.totalorder 1, %s17
      %p191 = scmp.lt.s32.totalorder %s17, 3
      %p192 = pnand %p190, %p191
      %p193 = pneg %p192
      // Predicated region
      $region29: #{tpu_custom_call.1} parent=5 // pred_check
        _
      $region30: #{tpu_custom_call.1} parent=5 // pred_check_branch
        %195 = sbr.rel (%p192) target = $region32
      $region31: #{tpu_custom_call.1} parent=5 // pred_region
        %s196 = ssub.s32 %s17, 1
        %s197 = sand.u32 %s44, 1
        %s198 = scalar_lea.sflag [#allocation3], %s197
        %s199 = sand.u32 %s44, 1
        %s200 = smul.addr %s199, 8
        %s201 = scalar_lea.vmem [#allocation2], %s200
        // Predicated region
        $region33: #{tpu_custom_call.1} parent=31 // pred_check
          %p202 = pneg %p57
        $region34: #{tpu_custom_call.1} parent=31 // pred_check_branch
          %204 = sbr.rel (%p202) target = $region36
        $region35: #{tpu_custom_call.1} parent=31 // pred_region
          %205 = dma.done %s198, 128
        $region36: #{tpu_custom_call.1} parent=31 // pred_fallthru
          _
        // Predicated region
        $region37: #{tpu_custom_call.1} parent=31 // pred_check
          %p206 = pneg %p78
        $region38: #{tpu_custom_call.1} parent=31 // pred_check_branch
          %208 = sbr.rel (%p206) target = $region40
        $region39: #{tpu_custom_call.1} parent=31 // pred_region
          %209 = dma.done [#allocation5], 128
        $region40: #{tpu_custom_call.1} parent=31 // pred_fallthru
          _
        // Predicated region
        $region41: #{tpu_custom_call.1} parent=31 // pred_check
          %p210 = pneg %p99
        $region42: #{tpu_custom_call.1} parent=31 // pred_check_branch
          %212 = sbr.rel (%p210) target = $region44
        $region43: #{tpu_custom_call.1} parent=31 // pred_region
          %213 = dma.done [#allocation8], 16
        $region44: #{tpu_custom_call.1} parent=31 // pred_fallthru
          _
        %214 = sfence
        %s215 = sand.u32 %s44, 1
        %s216 = scalar_lea.sflag [#allocation3], %s215
        %s217 = sand.u32 %s44, 1
        %s218 = smul.addr %s217, 8
        %s219 = scalar_lea.vmem [#allocation2], %s218
        %p220 = pneg %p57
        %p221 = pneg %p54
        %p222 = pneg %p78
        %p223 = pneg %p75
        %p224 = pneg %p99
        %p225 = pneg %p96
        %p226 = pneg %p127
        %p227 = pneg %p124
        %s228 = sand.u32 %s114, 1
        %s229 = scalar_lea.sflag [#allocation4], %s228
        %s230 = sand.u32 %s114, 1
        %s231 = smul.addr %s230, 16
        %s232 = scalar_lea.vmem [#allocation9], %s231
        %s233 = sld [smem:[#allocation7]]
        %s234 = sld [smem:[#allocation6]]
        %v235 = vld [vmem:[%s201] sm:$0x3]
        %v236 = vstv %s234
        %v237 = vmul.f32 %v236, %v235
        %v238 = vstv %s233
        %v239 = vadd.f32 %v238, %v237
        %s240 = sld [smem:[#allocation6 + $0x1]]
        %s241 = scalar_lea.vmem %s201, 2 [#allocation2]
        %v242 = vld [vmem:[%s241] sm:$0x3]
        %v243 = vstv %s240
        %v244 = vmul.f32 %v243, %v242
        %v245 = vadd.f32 %v239, %v244
        %s246 = sld [smem:[#allocation6 + $0x2]]
        %s247 = scalar_lea.vmem %s201, 4 [#allocation2]
        %v248 = vld [vmem:[%s247] sm:$0x3]
        %v249 = vstv %s246
        %v250 = vmul.f32 %v249, %v248
        %v251 = vadd.f32 %v245, %v250
        %s252 = sld [smem:[#allocation6 + $0x3]]
        %s253 = scalar_lea.vmem %s201, 6 [#allocation2]
        %v254 = vld [vmem:[%s253] sm:$0x3]
        %v255 = vstv %s252
        %v256 = vmul.f32 %v255, %v254
        %v257 = vadd.f32 %v251, %v256
        %258 = vst [vmem:[%s232] sm:$0x3] %v257
        %s259 = sld [smem:[#allocation7 + $0x1]]
        %s260 = sld [smem:[#allocation6 + $0x80]]
        %v261 = vld [vmem:[%s201] sm:$0x3]
        %v262 = vstv %s260
        %v263 = vmul.f32 %v262, %v261
        %v264 = vstv %s259
        %v265 = vadd.f32 %v264, %v263
        %s266 = sld [smem:[#allocation6 + $0x81]]
        %v267 = vld [vmem:[%s241] sm:$0x3]
        %v268 = vstv %s266
        %v269 = vmul.f32 %v268, %v267
        %v270 = vadd.f32 %v265, %v269
        %s271 = sld [smem:[#allocation6 + $0x82]]
        %v272 = vld [vmem:[%s247] sm:$0x3]
        %v273 = vstv %s271
        %v274 = vmul.f32 %v273, %v272
        %v275 = vadd.f32 %v270, %v274
        %s276 = sld [smem:[#allocation6 + $0x83]]
        %v277 = vld [vmem:[%s253] sm:$0x3]
        %v278 = vstv %s276
        %v279 = vmul.f32 %v278, %v277
        %v280 = vadd.f32 %v275, %v279
        %s281 = scalar_lea.vmem %s232, 2 [#allocation9]
        %282 = vst [vmem:[%s281] sm:$0x3] %v280
        %s283 = sld [smem:[#allocation7 + $0x2]]
        %s284 = sld [smem:[#allocation6 + $0x100]]
        %v285 = vld [vmem:[%s201] sm:$0x3]
        %v286 = vstv %s284
        %v287 = vmul.f32 %v286, %v285
        %v288 = vstv %s283
        %v289 = vadd.f32 %v288, %v287
        %s290 = sld [smem:[#allocation6 + $0x101]]
        %v291 = vld [vmem:[%s241] sm:$0x3]
        %v292 = vstv %s290
        %v293 = vmul.f32 %v292, %v291
        %v294 = vadd.f32 %v289, %v293
        %s295 = sld [smem:[#allocation6 + $0x102]]
        %v296 = vld [vmem:[%s247] sm:$0x3]
        %v297 = vstv %s295
        %v298 = vmul.f32 %v297, %v296
        %v299 = vadd.f32 %v294, %v298
        %s300 = sld [smem:[#allocation6 + $0x103]]
        %v301 = vld [vmem:[%s253] sm:$0x3]
        %v302 = vstv %s300
        %v303 = vmul.f32 %v302, %v301
        %v304 = vadd.f32 %v299, %v303
        %s305 = scalar_lea.vmem %s232, 4 [#allocation9]
        %306 = vst [vmem:[%s305] sm:$0x3] %v304
        %s307 = sld [smem:[#allocation7 + $0x3]]
        %s308 = sld [smem:[#allocation6 + $0x180]]
        %v309 = vld [vmem:[%s201] sm:$0x3]
        %v310 = vstv %s308
        %v311 = vmul.f32 %v310, %v309
        %v312 = vstv %s307
        %v313 = vadd.f32 %v312, %v311
        %s314 = sld [smem:[#allocation6 + $0x181]]
        %v315 = vld [vmem:[%s241] sm:$0x3]
        %v316 = vstv %s314
        %v317 = vmul.f32 %v316, %v315
        %v318 = vadd.f32 %v313, %v317
        %s319 = sld [smem:[#allocation6 + $0x182]]
        %v320 = vld [vmem:[%s247] sm:$0x3]
        %v321 = vstv %s319
        %v322 = vmul.f32 %v321, %v320
        %v323 = vadd.f32 %v318, %v322
        %s324 = sld [smem:[#allocation6 + $0x183]]
        %v325 = vld [vmem:[%s253] sm:$0x3]
        %v326 = vstv %s324
        %v327 = vmul.f32 %v326, %v325
        %v328 = vadd.f32 %v323, %v327
        %s329 = scalar_lea.vmem %s232, 6 [#allocation9]
        %330 = vst [vmem:[%s329] sm:$0x3] %v328
        %s331 = sld [smem:[#allocation7 + $0x4]]
        %s332 = sld [smem:[#allocation6 + $0x200]]
        %v333 = vld [vmem:[%s201] sm:$0x3]
        %v334 = vstv %s332
        %v335 = vmul.f32 %v334, %v333
        %v336 = vstv %s331
        %v337 = vadd.f32 %v336, %v335
        %s338 = sld [smem:[#allocation6 + $0x201]]
        %v339 = vld [vmem:[%s241] sm:$0x3]
        %v340 = vstv %s338
        %v341 = vmul.f32 %v340, %v339
        %v342 = vadd.f32 %v337, %v341
        %s343 = sld [smem:[#allocation6 + $0x202]]
        %v344 = vld [vmem:[%s247] sm:$0x3]
        %v345 = vstv %s343
        %v346 = vmul.f32 %v345, %v344
        %v347 = vadd.f32 %v342, %v346
        %s348 = sld [smem:[#allocation6 + $0x203]]
        %v349 = vld [vmem:[%s253] sm:$0x3]
        %v350 = vstv %s348
        %v351 = vmul.f32 %v350, %v349
        %v352 = vadd.f32 %v347, %v351
        %s353 = scalar_lea.vmem %s232, 8 [#allocation9]
        %354 = vst [vmem:[%s353] sm:$0x3] %v352
        %s355 = sld [smem:[#allocation7 + $0x5]]
        %s356 = sld [smem:[#allocation6 + $0x280]]
        %v357 = vld [vmem:[%s201] sm:$0x3]
        %v358 = vstv %s356
        %v359 = vmul.f32 %v358, %v357
        %v360 = vstv %s355
        %v361 = vadd.f32 %v360, %v359
        %s362 = sld [smem:[#allocation6 + $0x281]]
        %v363 = vld [vmem:[%s241] sm:$0x3]
        %v364 = vstv %s362
        %v365 = vmul.f32 %v364, %v363
        %v366 = vadd.f32 %v361, %v365
        %s367 = sld [smem:[#allocation6 + $0x282]]
        %v368 = vld [vmem:[%s247] sm:$0x3]
        %v369 = vstv %s367
        %v370 = vmul.f32 %v369, %v368
        %v371 = vadd.f32 %v366, %v370
        %s372 = sld [smem:[#allocation6 + $0x283]]
        %v373 = vld [vmem:[%s253] sm:$0x3]
        %v374 = vstv %s372
        %v375 = vmul.f32 %v374, %v373
        %v376 = vadd.f32 %v371, %v375
        %s377 = scalar_lea.vmem %s232, 10 [#allocation9]
        %378 = vst [vmem:[%s377] sm:$0x3] %v376
        %s379 = sld [smem:[#allocation7 + $0x6]]
        %s380 = sld [smem:[#allocation6 + $0x300]]
        %v381 = vld [vmem:[%s201] sm:$0x3]
        %v382 = vstv %s380
        %v383 = vmul.f32 %v382, %v381
        %v384 = vstv %s379
        %v385 = vadd.f32 %v384, %v383
        %s386 = sld [smem:[#allocation6 + $0x301]]
        %v387 = vld [vmem:[%s241] sm:$0x3]
        %v388 = vstv %s386
        %v389 = vmul.f32 %v388, %v387
        %v390 = vadd.f32 %v385, %v389
        %s391 = sld [smem:[#allocation6 + $0x302]]
        %v392 = vld [vmem:[%s247] sm:$0x3]
        %v393 = vstv %s391
        %v394 = vmul.f32 %v393, %v392
        %v395 = vadd.f32 %v390, %v394
        %s396 = sld [smem:[#allocation6 + $0x303]]
        %v397 = vld [vmem:[%s253] sm:$0x3]
        %v398 = vstv %s396
        %v399 = vmul.f32 %v398, %v397
        %v400 = vadd.f32 %v395, %v399
        %s401 = scalar_lea.vmem %s232, 12 [#allocation9]
        %402 = vst [vmem:[%s401] sm:$0x3] %v400
        %s403 = sld [smem:[#allocation7 + $0x7]]
        %s404 = sld [smem:[#allocation6 + $0x380]]
        %v405 = vld [vmem:[%s201] sm:$0x3]
        %v406 = vstv %s404
        %v407 = vmul.f32 %v406, %v405
        %v408 = vstv %s403
        %v409 = vadd.f32 %v408, %v407
        %s410 = sld [smem:[#allocation6 + $0x381]]
        %v411 = vld [vmem:[%s241] sm:$0x3]
        %v412 = vstv %s410
        %v413 = vmul.f32 %v412, %v411
        %v414 = vadd.f32 %v409, %v413
        %s415 = sld [smem:[#allocation6 + $0x382]]
        %v416 = vld [vmem:[%s247] sm:$0x3]
        %v417 = vstv %s415
        %v418 = vmul.f32 %v417, %v416
        %v419 = vadd.f32 %v414, %v418
        %s420 = sld [smem:[#allocation6 + $0x383]]
        %v421 = vld [vmem:[%s253] sm:$0x3]
        %v422 = vstv %s420
        %v423 = vmul.f32 %v422, %v421
        %v424 = vadd.f32 %v419, %v423
        %s425 = scalar_lea.vmem %s232, 14 [#allocation9]
        %426 = vst [vmem:[%s425] sm:$0x3] %v424
        %s427 = sand.u32 %s114, 1
        %s428 = scalar_lea.sflag [#allocation4], %s427
        %s429 = sand.u32 %s114, 1
        %s430 = smul.addr %s429, 16
        %s431 = scalar_lea.vmem [#allocation9], %s430
        // Predicated region
        $region45: #{tpu_custom_call.1} parent=31 // pred_check
          %p432 = pneg %p124
        $region46: #{tpu_custom_call.1} parent=31 // pred_check_branch
          %434 = sbr.rel (%p432) target = $region48
        $region47: #{tpu_custom_call.1} parent=31 // pred_region
          %s436 = ssub.s32 256, 256
          %437 = vsyncadd %s428, %s436
          %s438 = smul.addr %s26, 8
          %s439 = sadd.s32 %s27, %s438
          %s440 = smul.addr %s439, 32
          %s441 = scalar_lea.hbm %s3, %s440
          %s442 = sshll.u32 %s431, 4
          %s443 = int_to_ptr.vmem [resolvable:$true] %s442
          %448 = dma.vmem_to_hbm [thread:$0]  %s443, 256, %s441, %s428, 32, 32, 2
        $region48: #{tpu_custom_call.1} parent=31 // pred_fallthru
          _
      $region32: #{tpu_custom_call.1} parent=5 // pred_fallthru
        _
      %p449 = scmp.le.s32.totalorder 2, %s17
      // Predicated region
      $region49: #{tpu_custom_call.1} parent=5 // pred_check
        %p450 = pneg %p449
      $region50: #{tpu_custom_call.1} parent=5 // pred_check_branch
        %452 = sbr.rel (%p450) target = $region52
      $region51: #{tpu_custom_call.1} parent=5 // pred_region
        %s453 = ssub.s32 %s17, 2
        // Predicated region
        $region53: #{tpu_custom_call.1} parent=51 // pred_check
          %p454 = pneg %p130
        $region54: #{tpu_custom_call.1} parent=51 // pred_check_branch
          %456 = sbr.rel (%p454) target = $region56
        $region55: #{tpu_custom_call.1} parent=51 // pred_region
          %s457 = sand.u32 %s115, 1
          %s458 = scalar_lea.sflag [#allocation4], %s457
          %s459 = sand.u32 %s115, 1
          %s460 = smul.addr %s459, 16
          %s461 = scalar_lea.vmem [#allocation9], %s460
          %462 = dma.done %s458, 256
        $region56: #{tpu_custom_call.1} parent=51 // pred_fallthru
          _
      $region52: #{tpu_custom_call.1} parent=5 // pred_fallthru
        _
    $region6: #{tpu_custom_call.1} parent=1 // loop_footer
      %s21 = sadd.s32 1, %s17
    $region7: #{tpu_custom_call.1} parent=1 // loop_footer_branch
      %16 = sbr.rel target = $region3
    $region8: #{tpu_custom_call.1} parent=1 // loop_exit
      _
    %463 = vsyncpa [#allocation3], 1
    %s464 = scalar_lea.sflag [#allocation3], 1
    %465 = vsyncpa %s464, 1
    %466 = vsyncpa [#allocation4], 1
    %s467 = scalar_lea.sflag [#allocation4], 1
    %468 = vsyncpa %s467, 1
    %469 = vsyncpa [#allocation5], 1
    %s470 = scalar_lea.sflag [#allocation5], 1
    %471 = vsyncpa %s470, 1
    %472 = vsyncpa [#allocation8], 1

</llo_original>
